<compile_context>
chip_gen: v7x
topology: tpu7x:2x2x1
jax: 0.10.0
libtpu: 0.0.40
codegen_flags: <defaults>
</compile_context>

<pallas_src>
import jax
import jax.numpy as jnp
from jax.experimental import pallas as pl
from jax.experimental.pallas import tpu as pltpu

_LANE = 128
_SUBLANE = 8


def _round_up(v: int, m: int) -> int:
    return ((v + m - 1) // m) * m


def _cdiv(a: int, b: int) -> int:
    return (a + b - 1) // b


def _make_kernel(num_hidden: int, split: int):
    """Kernel for `num_hidden` FC blocks with the linear skip fused into layer 0.

    Ref order:
      x, w_fused0 (= [w0 | w_lin], bf16), b0 (f32),
      (w1 bf16, b1 f32), ..., (w_{n-1}, b_{n-1}), out (f32)
    `split` = lane-aligned padded width of hidden layer 0; columns [split:] of
    the fused matmul result are the linear-skip branch. `split` is a multiple
    of 128, so both slices are lane-aligned (free).
    """

    def kernel(*refs):
        x_ref = refs[0]
        wfused_ref = refs[1]
        b0_ref = refs[2]
        out_ref = refs[-1]

        # One bf16 MXU pass produces both the first hidden pre-activation and
        # the linear skip branch; accumulation in f32.
        res = jnp.dot(x_ref[...], wfused_ref[...],
                      preferred_element_type=jnp.float32)
        h = jnp.maximum(res[:, :split] + b0_ref[...], 0.0)  # f32
        lin = res[:, split:]                                 # f32

        # Remaining FC blocks (Linear + bias + ReLU; dropout == identity).
        for l in range(1, num_hidden):
            w_ref = refs[3 + 2 * (l - 1)]
            b_ref = refs[4 + 2 * (l - 1)]
            h = jnp.maximum(
                jnp.dot(h.astype(w_ref.dtype), w_ref[...],
                        preferred_element_type=jnp.float32) + b_ref[...],
                0.0,
            )

        out_ref[...] = (lin + h).astype(out_ref.dtype)

    return kernel


def _build_forward(num_hidden, input_dim, p_in, p_hidden, p_out, out_dim):
    """Returns the jitted per-call forward: fwd(x, *prepared_params)."""
    split = p_hidden[0]
    kernel = _make_kernel(num_hidden, split)

    def fwd(x, *params):
        B = x.shape[0]

        # Divisor-aware batch tile, capped at 256 rows. For B >= 64 force at
        # least 2 grid steps so both v7x TensorCores get work; the divisor
        # choice keeps b_pad - B below one small tile of zero rows.
        n_tiles = _cdiv(B, 256)
        if B >= 64:
            n_tiles = max(n_tiles, 2)
        tb = _round_up(_cdiv(B, n_tiles), _SUBLANE)
        b_pad = _round_up(B, tb)
        grid = (b_pad // tb,)

        # Only x is padded per call (zeros => math is exact); weights were
        # padded/fused/cast once at init.
        x_p = jnp.pad(
            x, ((0, b_pad - B), (0, p_in - input_dim))
        ).astype(jnp.bfloat16)

        # x / out stream over the batch grid (double-buffered); weights &
        # biases have constant block indices -> single buffer is enough.
        in_specs = [pl.BlockSpec((tb, p_in), lambda i: (i, 0))]
        in_specs += [
            pl.BlockSpec(p.shape, lambda i: (0, 0),
                         pipeline_mode=pl.Buffered(1))
            for p in params
        ]
        out_specs = pl.BlockSpec((tb, p_out), lambda i: (i, 0))

        # Cost estimate (advisory, helps XLA scheduling around the call).
        flops = 2 * b_pad * p_in * (p_hidden[0] + p_out)
        for l in range(1, num_hidden):
            flops += 2 * b_pad * p_hidden[l - 1] * p_hidden[l]
        weight_bytes = sum(int(p.size) * p.dtype.itemsize for p in params)
        bytes_accessed = (
            int(x_p.size) * x_p.dtype.itemsize
            + b_pad * p_out * 4
            + weight_bytes
        )
        cost = pl.CostEstimate(
            flops=flops, transcendentals=0, bytes_accessed=bytes_accessed
        )

        # VMEM budget: resident weights (single-buffered) + double-buffered
        # x / out tiles + headroom; capped at 64 MiB so it is valid on v7x.
        stream_bytes = 2 * (tb * p_in * 2 + tb * p_out * 4)
        needed = weight_bytes + stream_bytes + (8 << 20)
        vmem_limit = int(min(max(needed, 32 << 20), 64 << 20))

        out_p = pl.pallas_call(
            kernel,
            out_shape=jax.ShapeDtypeStruct((b_pad, p_out), jnp.float32),
            grid_spec=pl.GridSpec(
                grid=grid, in_specs=in_specs, out_specs=out_specs
            ),
            compiler_params=pltpu.CompilerParams(
                dimension_semantics=("parallel",),
                vmem_limit_bytes=vmem_limit,
            ),
            cost_estimate=cost,
        )(x_p, *params)

        # Strip batch + lane padding outside the kernel.
        return out_p[:B, :out_dim]

    return jax.jit(fwd)


class PartialLinearRegressionPallas:
    """Holds pre-padded / pre-fused / pre-cast parameters (done once) and a
    jitted forward whose only per-call work on weights is the pallas_call DMA.

    hidden_weights[i]: (in_i, out_i); hidden_biases[i]: (out_i,) or (1, out_i);
    w_linear: (input_dim, out_dim) with out_dim == hidden_dims[-1].
    """

    def __init__(self, hidden_weights, hidden_biases, w_linear,
                 param_dtype=jnp.bfloat16):
        num_hidden = len(hidden_weights)
        assert num_hidden >= 1, "expects at least one FCBlock"
        input_dim = int(hidden_weights[0].shape[0])
        out_dim = int(w_linear.shape[1])
        assert int(w_linear.shape[0]) == input_dim, "w_linear in-dim mismatch"
        assert out_dim == int(hidden_weights[-1].shape[1]), (
            "linear skip out_dim must equal last hidden_dim"
        )

        p_in = _round_up(input_dim, _LANE)
        p_hidden = [_round_up(int(w.shape[1]), _LANE) for w in hidden_weights]
        p_out = _round_up(out_dim, _LANE)

        # ---- one-time operand prep (zero padding => math is exact) -------
        w0 = jnp.asarray(hidden_weights[0], jnp.float32)
        w0_p = jnp.pad(
            w0, ((0, p_in - w0.shape[0]), (0, p_hidden[0] - w0.shape[1]))
        )
        wlin_p = jnp.pad(
            jnp.asarray(w_linear, jnp.float32),
            ((0, p_in - input_dim), (0, p_out - out_dim)),
        )
        # Fused first-layer weight: one MXU pass feeds both branches.
        w_fused = jnp.concatenate([w0_p, wlin_p], axis=1).astype(param_dtype)

        b0 = jnp.reshape(jnp.asarray(hidden_biases[0], jnp.float32), (1, -1))
        b0_p = jnp.pad(b0, ((0, 0), (0, p_hidden[0] - b0.shape[1])))

        params = [w_fused, b0_p]
        for l in range(1, num_hidden):
            w = jnp.asarray(hidden_weights[l], jnp.float32)
            b = jnp.reshape(jnp.asarray(hidden_biases[l], jnp.float32), (1, -1))
            w_p = jnp.pad(
                w,
                ((0, p_hidden[l - 1] - w.shape[0]),
                 (0, p_hidden[l] - w.shape[1])),
            ).astype(param_dtype)
            b_p = jnp.pad(b, ((0, 0), (0, p_hidden[l] - b.shape[1])))
            params += [w_p, b_p]

        self.params = [jax.device_put(p) for p in params]
        self._fwd = _build_forward(
            num_hidden, input_dim, p_in, tuple(p_hidden), p_out, out_dim
        )

    def __call__(self, x):
        return self._fwd(x, *self.params)


def reference_forward(x, hidden_weights, hidden_biases, w_linear):
    """Pure-JAX f32 reference matching the PyTorch forward (eval mode)."""
    h = x
    for w, b in zip(hidden_weights, hidden_biases):
        h = jnp.maximum(h @ w + jnp.reshape(b, (1, -1)), 0.0)
    return x @ w_linear + h


if __name__ == "__main__":
    # Config: input_dim=16, hidden_dims=(32, 64), batch=8, dropout ignored (eval).
    key = jax.random.PRNGKey(0)
    batch, input_dim = 8, 16
    hidden_dims = (32, 64)

    k_x, k_w0, k_b0, k_w1, k_b1, k_lin = jax.random.split(key, 6)

    x = jax.random.normal(k_x, (batch, input_dim), dtype=jnp.float32)

    # PyTorch nn.Linear stores weight as (out, in); pre-transpose to (in, out).
    w0 = jax.random.normal(k_w0, (hidden_dims[0], input_dim), jnp.float32) * 0.1
    b0 = jax.random.normal(k_b0, (hidden_dims[0],), jnp.float32) * 0.1
    w1 = jax.random.normal(k_w1, (hidden_dims[1], hidden_dims[0]), jnp.float32) * 0.1
    b1 = jax.random.normal(k_b1, (hidden_dims[1],), jnp.float32) * 0.1
    w_lin = jax.random.normal(k_lin, (hidden_dims[1], input_dim), jnp.float32) * 0.1

    hidden_weights = [w0.T, w1.T]                           # (in, out)
    hidden_biases = [b0.reshape(1, -1), b1.reshape(1, -1)]  # (1, out)
    w_linear = w_lin.T                                      # (input_dim, out_dim)

    model = PartialLinearRegressionPallas(hidden_weights, hidden_biases, w_linear)
    out = model(x)
    out = jax.block_until_ready(out)

    ref = reference_forward(x, hidden_weights, hidden_biases, w_linear)
    assert out.shape == (batch, hidden_dims[-1]), out.shape
    # bf16 matmul inputs with f32 accumulation => relaxed tolerance vs f32 ref.
    assert jnp.allclose(out, ref, atol=3e-2, rtol=3e-2), "mismatch vs reference"

    print("KERNEL_OK")
</pallas_src>

<mosaic_0001>
module attributes {stable_mosaic.version = 11 : i64} {
  func.func @kernel(%arg0: i32, %arg1: memref<8x128xbf16, #tpu.memory_space<vmem>>, %arg2: memref<128x256xbf16, #tpu.memory_space<vmem>>, %arg3: memref<1x128xf32, #tpu.memory_space<vmem>>, %arg4: memref<128x128xbf16, #tpu.memory_space<vmem>>, %arg5: memref<1x128xf32, #tpu.memory_space<vmem>>, %arg6: memref<8x128xf32, #tpu.memory_space<vmem>>) attributes {dimension_semantics = [#tpu.dimension_semantics<parallel>], iteration_bounds = array<i64: 1>, scalar_prefetch = 0 : i64, scratch_operands = 0 : i64, tpu.core_type = #tpu.core_type<tc>, window_params = [{transform_indices = @transform_0, window_bounds = array<i64: 8, 128>}, {pipeline_mode = #tpu.pipeline_mode<synchronous>, transform_indices = @transform_1, window_bounds = array<i64: 128, 256>}, {pipeline_mode = #tpu.pipeline_mode<synchronous>, transform_indices = @transform_2, window_bounds = array<i64: 1, 128>}, {pipeline_mode = #tpu.pipeline_mode<synchronous>, transform_indices = @transform_3, window_bounds = array<i64: 128, 128>}, {pipeline_mode = #tpu.pipeline_mode<synchronous>, transform_indices = @transform_4, window_bounds = array<i64: 1, 128>}, {transform_indices = @transform_5, window_bounds = array<i64: 8, 128>}]} {
    %c0 = arith.constant 0 : index
    %c0_0 = arith.constant 0 : index
    %0 = vector.load %arg1[%c0, %c0_0] : memref<8x128xbf16, #tpu.memory_space<vmem>>, vector<8x128xbf16>
    %c0_1 = arith.constant 0 : index
    %c0_2 = arith.constant 0 : index
    %1 = vector.load %arg2[%c0_1, %c0_2] : memref<128x256xbf16, #tpu.memory_space<vmem>>, vector<128x256xbf16>
    %cst = arith.constant dense<0.000000e+00> : vector<8x256xf32>
    %2 = tpu.matmul %0, %1, %cst {dimension_numbers = #tpu.dot_dimension_numbers<[1], [0], [0], [1], [0, 0, 1, 1], [], []>} : vector<8x128xbf16>, vector<128x256xbf16>, vector<8x256xf32> -> vector<8x256xf32>
    %3 = vector.extract_strided_slice %2 {offsets = [0, 0], sizes = [8, 128], strides = [1, 1]} : vector<8x256xf32> to vector<8x128xf32>
    %c0_3 = arith.constant 0 : index
    %c0_4 = arith.constant 0 : index
    %4 = vector.load %arg3[%c0_3, %c0_4] : memref<1x128xf32, #tpu.memory_space<vmem>>, vector<1x128xf32>
    %5 = vector.broadcast %4 : vector<1x128xf32> to vector<8x128xf32>
    %6 = arith.addf %3, %5 : vector<8x128xf32>
    %cst_5 = arith.constant 0.000000e+00 : f32
    %7 = vector.broadcast %cst_5 : f32 to vector<8x128xf32>
    %8 = arith.maximumf %6, %7 : vector<8x128xf32>
    %9 = vector.extract_strided_slice %2 {offsets = [0, 128], sizes = [8, 128], strides = [1, 1]} : vector<8x256xf32> to vector<8x128xf32>
    %10 = arith.truncf %8 : vector<8x128xf32> to vector<8x128xbf16>
    %c0_6 = arith.constant 0 : index
    %c0_7 = arith.constant 0 : index
    %11 = vector.load %arg4[%c0_6, %c0_7] : memref<128x128xbf16, #tpu.memory_space<vmem>>, vector<128x128xbf16>
    %cst_8 = arith.constant dense<0.000000e+00> : vector<8x128xf32>
    %12 = tpu.matmul %10, %11, %cst_8 {dimension_numbers = #tpu.dot_dimension_numbers<[1], [0], [0], [1], [0, 0, 1, 1], [], []>} : vector<8x128xbf16>, vector<128x128xbf16>, vector<8x128xf32> -> vector<8x128xf32>
    %c0_9 = arith.constant 0 : index
    %c0_10 = arith.constant 0 : index
    %13 = vector.load %arg5[%c0_9, %c0_10] : memref<1x128xf32, #tpu.memory_space<vmem>>, vector<1x128xf32>
    %14 = vector.broadcast %13 : vector<1x128xf32> to vector<8x128xf32>
    %15 = arith.addf %12, %14 : vector<8x128xf32>
    %cst_11 = arith.constant 0.000000e+00 : f32
    %16 = vector.broadcast %cst_11 : f32 to vector<8x128xf32>
    %17 = arith.maximumf %15, %16 : vector<8x128xf32>
    %18 = arith.addf %9, %17 : vector<8x128xf32>
    %c0_12 = arith.constant 0 : index
    %c0_13 = arith.constant 0 : index
    %19 = vector.load %arg6[%c0_12, %c0_13] : memref<8x128xf32, #tpu.memory_space<vmem>>, vector<8x128xf32>
    tpu.vector_store %arg6[%c0_12, %c0_13], %18 {strides = array<i32>} : memref<8x128xf32, #tpu.memory_space<vmem>>, vector<8x128xf32>,
    return
  }
  func.func @transform_0(%arg0: i32) -> (i32, i32) {
    %c0_i32 = arith.constant 0 : i32
    %c0_i32_0 = arith.constant 0 : i32
    return %arg0, %c0_i32 : i32, i32
  }
  func.func @transform_1(%arg0: i32) -> (i32, i32) {
    %c0_i32 = arith.constant 0 : i32
    %c0_i32_0 = arith.constant 0 : i32
    %c0_i32_1 = arith.constant 0 : i32
    return %c0_i32, %c0_i32_0 : i32, i32
  }
  func.func @transform_2(%arg0: i32) -> (i32, i32) {
    %c0_i32 = arith.constant 0 : i32
    %c0_i32_0 = arith.constant 0 : i32
    %c0_i32_1 = arith.constant 0 : i32
    return %c0_i32, %c0_i32_0 : i32, i32
  }
  func.func @transform_3(%arg0: i32) -> (i32, i32) {
    %c0_i32 = arith.constant 0 : i32
    %c0_i32_0 = arith.constant 0 : i32
    %c0_i32_1 = arith.constant 0 : i32
    return %c0_i32, %c0_i32_0 : i32, i32
  }
  func.func @transform_4(%arg0: i32) -> (i32, i32) {
    %c0_i32 = arith.constant 0 : i32
    %c0_i32_0 = arith.constant 0 : i32
    %c0_i32_1 = arith.constant 0 : i32
    return %c0_i32, %c0_i32_0 : i32, i32
  }
  func.func @transform_5(%arg0: i32) -> (i32, i32) {
    %c0_i32 = arith.constant 0 : i32
    %c0_i32_0 = arith.constant 0 : i32
    return %arg0, %c0_i32 : i32, i32
  }
}

</mosaic_0001>

<llo_original>
// kernel: fwd.1
$region0: #{fwd.1}
  #allocation0 [shape = 'u32[]', space=smem, size = 0x4, offset = 0x4, fixed_abs, tag = 'smem constant byte address 0x4 - core index']
  #allocation1 [shape = 'u32[144,128]{1,0:T(1,128)}', space=vmem, size = 0x12000, scoped, tag = 'internal scratch']
  %s0 = inlined_call_operand.vmem [shape: bf16[8,128], index: 0, kind: input, shape index: {}]
  %s1 = inlined_call_operand.hbm [shape: bf16[128,256], index: 1, kind: input, shape index: {}]
  %s2 = inlined_call_operand.vmem [shape: f32[1,128], index: 2, kind: input, shape index: {}]
  %s3 = inlined_call_operand.hbm [shape: bf16[128,128], index: 3, kind: input, shape index: {}]
  %s4 = inlined_call_operand.vmem [shape: f32[1,128], index: 4, kind: input, shape index: {}]
  %s5 = inlined_call_operand.hbm [shape: f32[8,128], index: 5, kind: output, shape index: {}]
  %s6 = sld [smem:[#allocation0]]
  $region38: #{fwd.1} parent=0
    _
  %s8 = ssub.s32 1, %s6
  %s9 = scalar_select 0, %s8, %s6
  $region1: #{fwd.1} parent=0
    #allocation2 [shape = 'u8[65536]{0}', space=vmem, size = 0x10000, scoped, tag = 'input window, operand 1, single buffered']
    #allocation3 [shape = 's32[1]{0}', space=sflag, size = 0x4, scoped, tag = 'scoped memory for fwd.1']
    #allocation4 [shape = 's32[1]{0}', space=sflag, size = 0x4, scoped, tag = 'scoped memory for fwd.1']
    #allocation5 [shape = 'u8[32768]{0}', space=vmem, size = 0x8000, scoped, tag = 'input window, operand 3, single buffered']
    #allocation6 [shape = 's32[1]{0}', space=sflag, size = 0x4, scoped, tag = 'scoped memory for fwd.1']
    #allocation7 [shape = 'u8[4096]{0}', space=vmem, size = 0x1000, scoped, tag = 'output window, operand 0, single buffered']
    %10 = vsyncpa [#allocation3], 0
    %11 = vsyncpa [#allocation6], 0
    %12 = vsyncpa [#allocation4], 0
    // Predicated region
    $region2: #{fwd.1} parent=1 // pred_check
      _
    $region3: #{fwd.1} parent=1 // pred_check_branch
      %14 = sbr.rel (0) target = $region5
    $region4: #{fwd.1} parent=1 // pred_region
      _
    $region5: #{fwd.1} parent=1 // pred_fallthru
      _
    // Predicated region
    $region6: #{fwd.1} parent=1 // pred_check
      _
    $region7: #{fwd.1} parent=1 // pred_check_branch
      %16 = sbr.rel (0) target = $region9
    $region8: #{fwd.1} parent=1 // pred_region
      %s18 = ssub.s32 2048, 2048
      %19 = vsyncadd [#allocation3], %s18
      %s20 = sshll.u32 [#allocation2], 4
      %s21 = int_to_ptr.vmem [resolvable:$true] %s20
      %26 = dma.hbm_to_vmem [thread:$0]  %s1, 2048, %s21, [#allocation3], 128, 128, 8
    $region9: #{fwd.1} parent=1 // pred_fallthru
      _
    // Predicated region
    $region10: #{fwd.1} parent=1 // pred_check
      _
    $region11: #{fwd.1} parent=1 // pred_check_branch
      %28 = sbr.rel (0) target = $region13
    $region12: #{fwd.1} parent=1 // pred_region
      _
    $region13: #{fwd.1} parent=1 // pred_fallthru
      _
    // Predicated region
    $region14: #{fwd.1} parent=1 // pred_check
      _
    $region15: #{fwd.1} parent=1 // pred_check_branch
      %30 = sbr.rel (0) target = $region17
    $region16: #{fwd.1} parent=1 // pred_region
      %s32 = ssub.s32 1024, 1024
      %33 = vsyncadd [#allocation6], %s32
      %s34 = sshll.u32 [#allocation5], 4
      %s35 = int_to_ptr.vmem [resolvable:$true] %s34
      %40 = dma.hbm_to_vmem [thread:$0]  %s3, 1024, %s35, [#allocation6], 64, 64, 4
    $region17: #{fwd.1} parent=1 // pred_fallthru
      _
    // Predicated region
    $region18: #{fwd.1} parent=1 // pred_check
      _
    $region19: #{fwd.1} parent=1 // pred_check_branch
      %42 = sbr.rel (0) target = $region21
    $region20: #{fwd.1} parent=1 // pred_region
      _
    $region21: #{fwd.1} parent=1 // pred_fallthru
      _
    // Predicated region
    $region22: #{fwd.1} parent=1 // pred_check
      _
    $region23: #{fwd.1} parent=1 // pred_check_branch
      %44 = sbr.rel (0) target = $region25
    $region24: #{fwd.1} parent=1 // pred_region
      %45 = dma.done [#allocation3], 2048
    $region25: #{fwd.1} parent=1 // pred_fallthru
      _
    // Predicated region
    $region26: #{fwd.1} parent=1 // pred_check
      _
    $region27: #{fwd.1} parent=1 // pred_check_branch
      %47 = sbr.rel (0) target = $region29
    $region28: #{fwd.1} parent=1 // pred_region
      %48 = dma.done [#allocation6], 1024
    $region29: #{fwd.1} parent=1 // pred_fallthru
      _
    %v50 = vld [vmem:[%s0] sm:$0xf]
    %v51 = vld [vmem:[#allocation2] sm:$0xff]
    %v52 = vld [vmem:[#allocation2 + $0x8] sm:$0xff]
    %v53 = vld [vmem:[#allocation2 + $0x10] sm:$0xff]
    %v54 = vld [vmem:[#allocation2 + $0x18] sm:$0xff]
    %v55 = vld [vmem:[#allocation2 + $0x20] sm:$0xff]
    %v56 = vld [vmem:[#allocation2 + $0x28] sm:$0xff]
    %v57 = vld [vmem:[#allocation2 + $0x30] sm:$0xff]
    %v58 = vld [vmem:[#allocation2 + $0x38] sm:$0xff]
    %v59 = vld [vmem:[#allocation2 + $0x40] sm:$0xff]
    %v60 = vld [vmem:[#allocation2 + $0x48] sm:$0xff]
    %v61 = vld [vmem:[#allocation2 + $0x50] sm:$0xff]
    %v62 = vld [vmem:[#allocation2 + $0x58] sm:$0xff]
    %v63 = vld [vmem:[#allocation2 + $0x60] sm:$0xff]
    %v64 = vld [vmem:[#allocation2 + $0x68] sm:$0xff]
    %v65 = vld [vmem:[#allocation2 + $0x70] sm:$0xff]
    %v66 = vld [vmem:[#allocation2 + $0x78] sm:$0xff]
    %v83 = vunpack.c.l.b16 %v51
    %v84 = vunpack.c.h.b16 %v51
    %v85 = vunpack.c.l.b16 %v52
    %v86 = vunpack.c.h.b16 %v52
    %v87 = vunpack.c.l.b16 %v53
    %v88 = vunpack.c.h.b16 %v53
    %v89 = vunpack.c.l.b16 %v54
    %v90 = vunpack.c.h.b16 %v54
    %v91 = vunpack.c.l.b16 %v55
    %v92 = vunpack.c.h.b16 %v55
    %v93 = vunpack.c.l.b16 %v56
    %v94 = vunpack.c.h.b16 %v56
    %v95 = vunpack.c.l.b16 %v57
    %v96 = vunpack.c.h.b16 %v57
    %v97 = vunpack.c.l.b16 %v58
    %v98 = vunpack.c.h.b16 %v58
    %v99 = vunpack.c.l.b16 %v59
    %v100 = vunpack.c.h.b16 %v59
    %v101 = vunpack.c.l.b16 %v60
    %v102 = vunpack.c.h.b16 %v60
    %v103 = vunpack.c.l.b16 %v61
    %v104 = vunpack.c.h.b16 %v61
    %v105 = vunpack.c.l.b16 %v62
    %v106 = vunpack.c.h.b16 %v62
    %v107 = vunpack.c.l.b16 %v63
    %v108 = vunpack.c.h.b16 %v63
    %v109 = vunpack.c.l.b16 %v64
    %v110 = vunpack.c.h.b16 %v64
    %v111 = vunpack.c.l.b16 %v65
    %v112 = vunpack.c.h.b16 %v65
    %v113 = vunpack.c.l.b16 %v66
    %v114 = vunpack.c.h.b16 %v66
    %v115 = vpack.c.b16 %v85, %v83
    %v116 = vpack.c.b16 %v86, %v84
    %v117 = vpack.c.b16 %v89, %v87
    %v118 = vpack.c.b16 %v90, %v88
    %v119 = vpack.c.b16 %v93, %v91
    %v120 = vpack.c.b16 %v94, %v92
    %v121 = vpack.c.b16 %v97, %v95
    %v122 = vpack.c.b16 %v98, %v96
    %v123 = vpack.c.b16 %v101, %v99
    %v124 = vpack.c.b16 %v102, %v100
    %v125 = vpack.c.b16 %v105, %v103
    %v126 = vpack.c.b16 %v106, %v104
    %v127 = vpack.c.b16 %v109, %v107
    %v128 = vpack.c.b16 %v110, %v108
    %v129 = vpack.c.b16 %v113, %v111
    %v130 = vpack.c.b16 %v114, %v112
    %147 = vmatprep.subr.bf16.mxu0 %v116
    %148 = vmatpush1.bf16.msra.mxu0 %v115
    %149 = vmatprep.subr.bf16.mxu0 %v118
    %150 = vmatpush1.bf16.msra.mxu0 %v117
    %151 = vmatprep.subr.bf16.mxu0 %v120
    %152 = vmatpush1.bf16.msra.mxu0 %v119
    %153 = vmatprep.subr.bf16.mxu0 %v122
    %154 = vmatpush1.bf16.msra.mxu0 %v121
    %155 = vmatprep.subr.bf16.mxu0 %v124
    %156 = vmatpush1.bf16.msra.mxu0 %v123
    %157 = vmatprep.subr.bf16.mxu0 %v126
    %158 = vmatpush1.bf16.msra.mxu0 %v125
    %159 = vmatprep.subr.bf16.mxu0 %v128
    %160 = vmatpush1.bf16.msra.mxu0 %v127
    %161 = vmatprep.subr.bf16.mxu0 %v130
    %162 = vmatpush1.bf16.msra.mxu0 %v129
    %163 = vmatprep.subr.bf16.mxu0 0
    %164 = vmatpush1.bf16.msra.mxu0 0
    %165 = vmatprep.subr.bf16.mxu0 0
    %166 = vmatpush1.bf16.msra.mxu0 0
    %167 = vmatprep.subr.bf16.mxu0 0
    %168 = vmatpush1.bf16.msra.mxu0 0
    %169 = vmatprep.subr.bf16.mxu0 0
    %170 = vmatpush1.bf16.msra.mxu0 0
    %171 = vmatprep.subr.bf16.mxu0 0
    %172 = vmatpush1.bf16.msra.mxu0 0
    %173 = vmatprep.subr.bf16.mxu0 0
    %174 = vmatpush1.bf16.msra.mxu0 0
    %175 = vmatprep.subr.bf16.mxu0 0
    %176 = vmatpush1.bf16.msra.mxu0 0
    %177 = vmatprep.subr.bf16.mxu0 0
    %178 = vmatpush1.bf16.msra.mxu0 0
    %179 = vmatprep.mubr.bf16.mxu0 0
    %180 = vmatmul.mubr.bf16.gmra.mrb[0].mxu0 %v50
    %v181 = vpop.f32.mrb[0].mxu0
    %v182 = vadd.f32 0.0, %v181
    %v183 = vpop.f32.mrb[0].mxu0
    %v184 = vadd.f32 0.0, %v183
    %v185 = vpop.f32.mrb[0].mxu0
    %v186 = vpop.f32.mrb[0].mxu0
    %187 = vdwg.mxu0
    %v188 = vld [vmem:[%s2] sm:$0x1]
    %v190 = vlaneseq
    %v191 = vshrl.u32 %v190, 7
    %v192 = vsub.s32 0, %v191
    %v193 = vrot.slane %v188, %v192
    %v195 = vadd.f32 %v182, %v193
    %v196 = vmax.f32 %v195, 0.0
    %v197 = vpack.c.bf16 %v196, %v196
    %v198 = vld [vmem:[#allocation5] sm:$0xf]
    %v199 = vld [vmem:[#allocation5 + $0x4] sm:$0xf]
    %v200 = vld [vmem:[#allocation5 + $0x8] sm:$0xf]
    %v201 = vld [vmem:[#allocation5 + $0xc] sm:$0xf]
    %v202 = vld [vmem:[#allocation5 + $0x10] sm:$0xf]
    %v203 = vld [vmem:[#allocation5 + $0x14] sm:$0xf]
    %v204 = vld [vmem:[#allocation5 + $0x18] sm:$0xf]
    %v205 = vld [vmem:[#allocation5 + $0x1c] sm:$0xf]
    %v206 = vld [vmem:[#allocation5 + $0x20] sm:$0xf]
    %v207 = vld [vmem:[#allocation5 + $0x24] sm:$0xf]
    %v208 = vld [vmem:[#allocation5 + $0x28] sm:$0xf]
    %v209 = vld [vmem:[#allocation5 + $0x2c] sm:$0xf]
    %v210 = vld [vmem:[#allocation5 + $0x30] sm:$0xf]
    %v211 = vld [vmem:[#allocation5 + $0x34] sm:$0xf]
    %v212 = vld [vmem:[#allocation5 + $0x38] sm:$0xf]
    %v213 = vld [vmem:[#allocation5 + $0x3c] sm:$0xf]
    %v214 = vld [vmem:[%s4] sm:$0x1]
    %v216 = vlaneseq
    %v217 = vshrl.u32 %v216, 7
    %v218 = vsub.s32 0, %v217
    %v219 = vrot.slane %v214, %v218
    %v237 = vunpack.c.l.b16 %v198
    %v238 = vunpack.c.l.b16 %v199
    %v239 = vunpack.c.l.b16 %v200
    %v240 = vunpack.c.l.b16 %v201
    %v241 = vunpack.c.l.b16 %v202
    %v242 = vunpack.c.l.b16 %v203
    %v243 = vunpack.c.l.b16 %v204
    %v244 = vunpack.c.l.b16 %v205
    %v245 = vunpack.c.l.b16 %v206
    %v246 = vunpack.c.l.b16 %v207
    %v247 = vunpack.c.l.b16 %v208
    %v248 = vunpack.c.l.b16 %v209
    %v249 = vunpack.c.l.b16 %v210
    %v250 = vunpack.c.l.b16 %v211
    %v251 = vunpack.c.l.b16 %v212
    %v252 = vunpack.c.l.b16 %v213
    %v253 = vpack.c.b16 %v238, %v237
    %v254 = vpack.c.b16 %v240, %v239
    %v255 = vpack.c.b16 %v242, %v241
    %v256 = vpack.c.b16 %v244, %v243
    %v257 = vpack.c.b16 %v246, %v245
    %v258 = vpack.c.b16 %v248, %v247
    %v259 = vpack.c.b16 %v250, %v249
    %v260 = vpack.c.b16 %v252, %v251
    %269 = vmatprep.subr.bf16.mxu0 0
    %270 = vmatpush1.bf16.msra.mxu0 %v253
    %271 = vmatprep.subr.bf16.mxu0 0
    %272 = vmatpush1.bf16.msra.mxu0 %v254
    %273 = vmatprep.subr.bf16.mxu0 0
    %274 = vmatpush1.bf16.msra.mxu0 %v255
    %275 = vmatprep.subr.bf16.mxu0 0
    %276 = vmatpush1.bf16.msra.mxu0 %v256
    %277 = vmatprep.subr.bf16.mxu0 0
    %278 = vmatpush1.bf16.msra.mxu0 %v257
    %279 = vmatprep.subr.bf16.mxu0 0
    %280 = vmatpush1.bf16.msra.mxu0 %v258
    %281 = vmatprep.subr.bf16.mxu0 0
    %282 = vmatpush1.bf16.msra.mxu0 %v259
    %283 = vmatprep.subr.bf16.mxu0 0
    %284 = vmatpush1.bf16.msra.mxu0 %v260
    %285 = vmatprep.subr.bf16.mxu0 0
    %286 = vmatpush1.bf16.msra.mxu0 0
    %287 = vmatprep.subr.bf16.mxu0 0
    %288 = vmatpush1.bf16.msra.mxu0 0
    %289 = vmatprep.subr.bf16.mxu0 0
    %290 = vmatpush1.bf16.msra.mxu0 0
    %291 = vmatprep.subr.bf16.mxu0 0
    %292 = vmatpush1.bf16.msra.mxu0 0
    %293 = vmatprep.subr.bf16.mxu0 0
    %294 = vmatpush1.bf16.msra.mxu0 0
    %295 = vmatprep.subr.bf16.mxu0 0
    %296 = vmatpush1.bf16.msra.mxu0 0
    %297 = vmatprep.subr.bf16.mxu0 0
    %298 = vmatpush1.bf16.msra.mxu0 0
    %299 = vmatprep.subr.bf16.mxu0 0
    %300 = vmatpush1.bf16.msra.mxu0 0
    %301 = vmatprep.mubr.bf16.mxu0 0
    %302 = vmatmul.mubr.bf16.gmra.mrb[0].mxu0 %v197
    %v303 = vpop.f32.mrb[0].mxu0
    %v304 = vadd.f32 %v219, %v303
    %v305 = vpop.f32.mrb[0].mxu0
    %v306 = vpop.f32.mrb[0].mxu0
    %v307 = vpop.f32.mrb[0].mxu0
    %308 = vdwg.mxu0
    %v309 = vmax.f32 %v304, 0.0
    %v310 = vadd.f32 %v184, %v309
    %311 = vst [vmem:[#allocation7] sm:$0xff] %v310
    // Predicated region
    $region30: #{fwd.1} parent=1 // pred_check
      _
    $region31: #{fwd.1} parent=1 // pred_check_branch
      %313 = sbr.rel (0) target = $region33
    $region32: #{fwd.1} parent=1 // pred_region
      %s315 = ssub.s32 128, 128
      %316 = vsyncadd [#allocation4], %s315
      %s318 = sshll.u32 [#allocation7], 4
      %s319 = int_to_ptr.vmem [resolvable:$true] %s318
      %321 = dma.vmem_to_hbm [thread:$0]  %s319, 128, %s5, [#allocation4]
    $region33: #{fwd.1} parent=1 // pred_fallthru
      _
    // Predicated region
    $region34: #{fwd.1} parent=1 // pred_check
      _
    $region35: #{fwd.1} parent=1 // pred_check_branch
      %323 = sbr.rel (0) target = $region37
    $region36: #{fwd.1} parent=1 // pred_region
      %324 = dma.done [#allocation4], 128
    $region37: #{fwd.1} parent=1 // pred_fallthru
      _
    %325 = vsyncpa [#allocation3], 1
    %326 = vsyncpa [#allocation6], 1
    %327 = vsyncpa [#allocation4], 1

</llo_original>
